<compile_context>
chip_gen: v7x
topology: tpu7x:2x2x1
jax: 0.10.0
libtpu: 0.0.40
codegen_flags: <defaults>
</compile_context>

<pallas_src>
import functools

import jax
import jax.numpy as jnp
from jax import lax
from jax.experimental import pallas as pl
from jax.experimental.pallas import tpu as pltpu


# --------------------------------------------------------------------------- #
# Kernels
# --------------------------------------------------------------------------- #
def _single_block_kernel(x_ref, o_ref, *, acc_dtype):
    # Whole (tiny) array resident in VMEM: one reduction, no accumulator logic.
    o_ref[...] = jnp.sum(x_ref[...].astype(acc_dtype), axis=1).astype(o_ref.dtype)


def _tiled_kernel(x_ref, o_ref, acc_ref, *, strip_rows, last_valid, acc_dtype):
    # Grid = (B tiles [parallel], D tiles [parallel], S tiles [arbitrary,
    # reduction, innermost]).
    b_tile, seq_tile, d_tile = x_ref.shape
    s = pl.program_id(2)
    n_s = pl.num_programs(2)

    @pl.when(s == 0)
    def _():
        acc_ref[...] = jnp.zeros_like(acc_ref)

    def add_strip(strip_idx, valid_rows=None):
        # strip_idx is either a static Python int or a traced loop index.
        start = strip_idx * strip_rows
        if not isinstance(start, int):
            start = pl.multiple_of(start, strip_rows)
        xs = x_ref[:, pl.ds(start, strip_rows), :].astype(acc_dtype)
        if valid_rows is not None:
            # Ragged last S tile: zero out the rows past the true sequence end
            # (the OOB region of the block holds unspecified data).
            row = lax.broadcasted_iota(jnp.int32, (1, strip_rows, 1), 1)
            xs = jnp.where(row < valid_rows, xs, jnp.zeros((), acc_dtype))
        # Collapse the strip in groups of 8 sublanes with elementwise (VPU)
        # adds; the single cross-sublane (XLU) reduce + output cast are done
        # once, in the finalize branch.
        acc_ref[...] += jnp.sum(
            xs.reshape(b_tile, strip_rows // 8, 8, d_tile), axis=1)

    def add_full_strips(n_strips):
        if n_strips <= 0:
            return

        def body(i, carry):
            add_strip(i)
            return carry

        lax.fori_loop(0, n_strips, body, 0, unroll=(n_strips <= 16))

    n_strips = seq_tile // strip_rows
    ragged = last_valid != seq_tile  # trace-time constant

    if not ragged:
        add_full_strips(n_strips)
    else:
        @pl.when(s != n_s - 1)
        def _():
            add_full_strips(n_strips)

        @pl.when(s == n_s - 1)
        def _():
            full = last_valid // strip_rows
            rem = last_valid - full * strip_rows
            add_full_strips(full)
            if rem > 0:
                add_strip(full, valid_rows=rem)

    @pl.when(s == n_s - 1)
    def _():
        o_ref[...] = jnp.sum(acc_ref[...], axis=1).astype(o_ref.dtype)


# --------------------------------------------------------------------------- #
# Trace-time helpers
# --------------------------------------------------------------------------- #
def _pick_strip(seq_tile, sub, max_strip=512):
    """Largest multiple of the dtype packing `sub` dividing seq_tile (<= max);
    falls back to the whole tile (seq_tile is always a multiple of 8)."""
    best = None
    t = sub
    lim = min(seq_tile, max_strip)
    while t <= lim:
        if seq_tile % t == 0:
            best = t
        t += sub
    return best if best is not None else seq_tile


def _largest_lane_tile(D, cap_elems):
    """Largest multiple of 128 dividing D and <= cap_elems (D itself if it is
    not 128-aligned)."""
    if D % 128 != 0:
        return D
    best = 128
    t = 128
    lim = min(D, max(cap_elems, 128))
    while t <= lim:
        if D % t == 0:
            best = t
        t += 128
    return best


def _tpu_info():
    """(tensorcores_per_chip, vmem_bytes_per_core) with safe fallbacks."""
    cores = 1
    vmem = 128 * 1024 * 1024
    kind = ""
    try:
        kind = jax.devices()[0].device_kind.lower()
    except Exception:
        pass
    try:
        info = pltpu.get_tpu_info()
        v = getattr(info, "vmem_capacity_bytes", None)
        if v:
            vmem = int(v)
        for attr in ("num_cores", "tensorcore_count", "num_tensorcores",
                     "cores_per_chip"):
            c = getattr(info, attr, None)
            if c:
                cores = int(c)
                break
    except Exception:
        pass
    if "v7" in kind or "7x" in kind:
        cores = max(cores, 2)
        vmem = min(vmem, 64 * 1024 * 1024)
    return cores, vmem


# --------------------------------------------------------------------------- #
# Wrapper
# --------------------------------------------------------------------------- #
def global_sum_pool(x, dim=1, *, b_tile=None, seq_tile=None, d_tile=None,
                    target_block_bytes=None,
                    single_block_bytes=1 * 1024 * 1024,
                    vmem_limit_bytes=None):
    """PyTorch GlobalSumPool.forward: torch.sum(x, dim) (default dim=1)."""
    assert x.ndim >= 2, "expected at least a 2-D input"
    ndim = x.ndim
    if dim < 0:
        dim += ndim
    assert 0 <= dim < ndim, "invalid reduction dim"
    out_shape_full = x.shape[:dim] + x.shape[dim + 1:]

    # TODO(synk): non-default dims go through a moveaxis (extra transpose);
    # only dim=1 is the zero-copy layout.
    if dim != 1:
        x = jnp.moveaxis(x, dim, 1)

    B, S = int(x.shape[0]), int(x.shape[1])
    feat_shape = x.shape[2:]
    D = 1
    for d in feat_shape:
        D *= int(d)

    out_dtype = x.dtype
    # TODO(synk): PyTorch promotes integer/bool sums to int64; int64 is not
    # practical on TPU, so the input dtype is kept (int32 accumulation).
    if B == 0 or S == 0 or D == 0:
        return jnp.zeros(out_shape_full, out_dtype)

    x3 = x.reshape(B, S, D)
    itemsize = x3.dtype.itemsize
    out_itemsize = jnp.dtype(out_dtype).itemsize
    acc_dtype = jnp.float32 if jnp.issubdtype(x3.dtype, jnp.inexact) else jnp.int32
    total_bytes = B * S * D * itemsize

    cost = pl.CostEstimate(
        flops=B * S * D,
        transcendentals=0,
        bytes_accessed=total_bytes + B * D * out_itemsize,
    )

    num_cores, vmem_cap = _tpu_info()
    if target_block_bytes is None:
        target_block_bytes = (12 * 1024 * 1024 if num_cores >= 2
                              else 16 * 1024 * 1024)
    if vmem_limit_bytes is None:
        vmem_limit_bytes = min(int(0.75 * vmem_cap),
                               48 * 1024 * 1024 if num_cores >= 2
                               else 80 * 1024 * 1024)

    # ---- Fast path: tiny inputs as a single VMEM block -------------------- #
    if total_bytes <= single_block_bytes:
        out = pl.pallas_call(
            functools.partial(_single_block_kernel, acc_dtype=acc_dtype),
            out_shape=jax.ShapeDtypeStruct((B, D), out_dtype),
            cost_estimate=cost,
            compiler_params=pltpu.CompilerParams(
                vmem_limit_bytes=vmem_limit_bytes),
        )(x3)
        return out.reshape(out_shape_full)

    # ---- Tiled / pipelined path ------------------------------------------- #
    sub = max(8, 32 // itemsize)  # sublane packing rows for the input dtype

    # Tiny reduce dims (< 8 rows) cannot satisfy the sublane block constraint;
    # a <=7-row zero pad is negligible and keeps the kernel uniform.
    if S < 8:
        x3 = jnp.pad(x3, ((0, 0), (0, 8 - S), (0, 0)))
        S = 8  # zero rows do not change the sum

    # Batch tile: bound block + accumulator footprint in B.
    d_min = 128 if D % 128 == 0 else D
    if b_tile is None:
        if B <= 8 or B * sub * d_min * itemsize <= target_block_bytes:
            b_tile = B
        else:
            cap = max(8, (target_block_bytes // (sub * d_min * itemsize)) // 8 * 8)
            b_tile = max(8, min(cap, (B // 8) * 8))
    assert b_tile == B or b_tile % 8 == 0, \
        "b_tile must equal B or be a multiple of 8"

    # Feature (lane) tile: generation-aware.
    cap_elems = max(128, target_block_bytes // max(1, b_tile * sub * itemsize))
    if d_tile is None:
        if D % 128 != 0:
            d_tile = D
        elif num_cores <= 1:
            # Single TensorCore: full-D rows -> one contiguous DMA per row.
            d_tile = D if D <= cap_elems else _largest_lane_tile(D, cap_elems)
        else:
            # Megacore (v7x): an even number of maximally wide D tiles.
            d_tile = None
            for k in (2, 4, 8, 16, 32, 64):
                if D % k == 0 and (D // k) % 128 == 0 and (D // k) <= cap_elems:
                    d_tile = D // k
                    break
            if d_tile is None:
                d_tile = D if D <= cap_elems else _largest_lane_tile(D, cap_elems)
    assert d_tile == D or d_tile % 128 == 0, \
        "d_tile must equal D or be a multiple of 128"

    # Sequence (reduction) tile.
    s_cap = max(8, (S // 8) * 8)
    if seq_tile is None:
        budget_rows = target_block_bytes // max(1, b_tile * d_tile * itemsize)
        budget_rows = max(sub, (budget_rows // sub) * sub)
        seq_tile = min(budget_rows, s_cap)
    else:
        seq_tile = min(max(8, (seq_tile // 8) * 8), s_cap)
    assert seq_tile % 8 == 0

    # VMEM budget audit (double-buffered input, upcast strips, f32/int32 acc,
    # double-buffered output); clamp seq_tile until it fits.
    def _vmem_est(st, strips):
        return (2 * b_tile * st * d_tile * itemsize
                + 2 * b_tile * strips * d_tile * 4
                + b_tile * 8 * d_tile * 4
                + 2 * b_tile * d_tile * out_itemsize)

    strip_rows = _pick_strip(seq_tile, sub)
    while seq_tile > 8 and _vmem_est(seq_tile, strip_rows) > int(0.85 * vmem_limit_bytes):
        seq_tile = max(8, (seq_tile // 2 // 8) * 8)
        strip_rows = _pick_strip(seq_tile, sub)
    assert strip_rows % 8 == 0 and seq_tile % strip_rows == 0

    grid = (pl.cdiv(B, b_tile), pl.cdiv(D, d_tile), pl.cdiv(S, seq_tile))
    last_valid = S - (grid[2] - 1) * seq_tile  # rows of the last (ragged) S tile

    kernel = functools.partial(_tiled_kernel, strip_rows=strip_rows,
                               last_valid=last_valid, acc_dtype=acc_dtype)

    out = pl.pallas_call(
        kernel,
        out_shape=jax.ShapeDtypeStruct((B, D), out_dtype),
        grid_spec=pltpu.PrefetchScalarGridSpec(
            num_scalar_prefetch=0,
            grid=grid,
            in_specs=[pl.BlockSpec((b_tile, seq_tile, d_tile),
                                   lambda b, j, s: (b, s, j))],
            out_specs=pl.BlockSpec((b_tile, d_tile), lambda b, j, s: (b, j)),
            scratch_shapes=[pltpu.VMEM((b_tile, 8, d_tile), acc_dtype)],
        ),
        cost_estimate=cost,
        compiler_params=pltpu.CompilerParams(
            dimension_semantics=("parallel", "parallel", "arbitrary"),
            vmem_limit_bytes=vmem_limit_bytes,
        ),
    )(x3)
    return out.reshape(out_shape_full)


# --------------------------------------------------------------------------- #
# Self-test
# --------------------------------------------------------------------------- #
if __name__ == "__main__":
    key = jax.random.PRNGKey(0)
    k0, k1, k2, k3, k4, k5 = jax.random.split(key, 6)

    # 1) Primary 4-D input (B, C, H, W), default dim=1 -> single-block path.
    x1 = jax.random.normal(k0, (2, 4, 16, 16), dtype=jnp.float32)
    out1 = jax.block_until_ready(global_sum_pool(x1))
    ref1 = jnp.sum(x1, axis=1)
    assert out1.shape == ref1.shape
    assert jnp.allclose(out1, ref1, atol=1e-4, rtol=1e-5)

    # 2) Non-default dim (handled via moveaxis).
    out1b = jax.block_until_ready(global_sum_pool(x1, dim=2))
    ref1b = jnp.sum(x1, axis=2)
    assert out1b.shape == ref1b.shape
    assert jnp.allclose(out1b, ref1b, atol=1e-4, rtol=1e-5)

    # 3) Forced tiled path (parallel B/D + resident accumulator), f32.
    x2 = jax.random.normal(k1, (2, 64, 256), dtype=jnp.float32)
    out2 = jax.block_until_ready(
        global_sum_pool(x2, seq_tile=16, d_tile=128, single_block_bytes=0))
    ref2 = jnp.sum(x2, axis=1)
    assert out2.shape == ref2.shape
    assert jnp.allclose(out2, ref2, atol=1e-4, rtol=1e-5)

    # 4) bf16 with a ragged reduced axis (exercises in-kernel masking, no pad).
    x3 = jax.random.normal(k2, (2, 40, 256), dtype=jnp.bfloat16)
    out3 = jax.block_until_ready(
        global_sum_pool(x3, seq_tile=16, single_block_bytes=0))
    ref3 = jnp.sum(x3.astype(jnp.float32), axis=1)
    assert out3.shape == ref3.shape
    assert jnp.allclose(out3.astype(jnp.float32), ref3, atol=0.5, rtol=3e-2)

    # 5) Batch tiling with a ragged last B tile.
    x4 = jax.random.normal(k3, (12, 24, 256), dtype=jnp.float32)
    out4 = jax.block_until_ready(
        global_sum_pool(x4, b_tile=8, d_tile=128, seq_tile=8,
                        single_block_bytes=0))
    ref4 = jnp.sum(x4, axis=1)
    assert out4.shape == ref4.shape
    assert jnp.allclose(out4, ref4, atol=1e-4, rtol=1e-5)

    # 6) Integer input: exact int32 accumulation through the tiled path.
    x5 = jax.random.randint(k4, (2, 32, 128), -100, 100, dtype=jnp.int32)
    out5 = jax.block_until_ready(global_sum_pool(x5, single_block_bytes=0))
    ref5 = jnp.sum(x5, axis=1)
    assert out5.shape == ref5.shape
    assert jnp.array_equal(out5, ref5)

    # 7) Tiny reduced axis (S < 8) through the tiled path.
    x6 = jax.random.normal(k5, (2, 5, 128), dtype=jnp.float32)
    out6 = jax.block_until_ready(global_sum_pool(x6, single_block_bytes=0))
    ref6 = jnp.sum(x6, axis=1)
    assert out6.shape == ref6.shape
    assert jnp.allclose(out6, ref6, atol=1e-4, rtol=1e-5)

    print("KERNEL_OK")
</pallas_src>

<mosaic_0001>
module attributes {stable_mosaic.version = 11 : i64} {
  func.func @_single_block_kernel(%arg0: memref<2x4x256xf32, #tpu.memory_space<vmem>>, %arg1: memref<2x256xf32, #tpu.memory_space<vmem>>) attributes {dimension_semantics = [], scalar_prefetch = 0 : i64, scratch_operands = 0 : i64, tpu.core_type = #tpu.core_type<tc>} {
    %c0 = arith.constant 0 : index
    %c0_0 = arith.constant 0 : index
    %c0_1 = arith.constant 0 : index
    %0 = vector.load %arg0[%c0, %c0_0, %c0_1] : memref<2x4x256xf32, #tpu.memory_space<vmem>>, vector<2x4x256xf32>
    %cst = arith.constant dense<0.000000e+00> : vector<2x256xf32>
    %1 = vector.multi_reduction <add>, %0, %cst [1] : vector<2x4x256xf32> to vector<2x256xf32>
    %c0_2 = arith.constant 0 : index
    %c0_3 = arith.constant 0 : index
    %2 = vector.load %arg1[%c0_2, %c0_3] : memref<2x256xf32, #tpu.memory_space<vmem>>, vector<2x256xf32>
    tpu.vector_store %arg1[%c0_2, %c0_3], %1 {strides = array<i32>} : memref<2x256xf32, #tpu.memory_space<vmem>>, vector<2x256xf32>,
    return
  }
}

</mosaic_0001>

<llo_original>
// kernel: tpu_custom_call.1
$region0: #{tpu_custom_call.1}
  #allocation0 [shape = 'u32[]', space=smem, size = 0x4, offset = 0x4, fixed_abs, tag = 'smem constant byte address 0x4 - core index']
  #allocation1 [shape = 'u32[144,128]{1,0:T(1,128)}', space=vmem, size = 0x12000, scoped, tag = 'internal scratch']
  %s0 = inlined_call_operand.hbm [shape: f32[2,4,256], index: 0, kind: input, shape index: {}]
  %s1 = inlined_call_operand.hbm [shape: f32[2,256], index: 1, kind: output, shape index: {}]
  %s2 = sld [smem:[#allocation0]]
  $region18: #{tpu_custom_call.1} parent=0
    _
  %s4 = ssub.s32 1, %s2
  %s5 = scalar_select 0, %s4, %s2
  $region1: #{tpu_custom_call.1} parent=0
    #allocation2 [shape = 'u8[8192]{0}', space=vmem, size = 0x2000, scoped, tag = 'input window, operand 0, single buffered']
    #allocation3 [shape = 's32[1]{0}', space=sflag, size = 0x4, scoped, tag = 'scoped memory for tpu_custom_call.1']
    #allocation4 [shape = 's32[1]{0}', space=sflag, size = 0x4, scoped, tag = 'scoped memory for tpu_custom_call.1']
    #allocation5 [shape = 'u8[2048]{0}', space=vmem, size = 0x800, scoped, tag = 'output window, operand 0, single buffered']
    %6 = vsyncpa [#allocation3], 0
    %7 = vsyncpa [#allocation4], 0
    // Predicated region
    $region2: #{tpu_custom_call.1} parent=1 // pred_check
      _
    $region3: #{tpu_custom_call.1} parent=1 // pred_check_branch
      %9 = sbr.rel (0) target = $region5
    $region4: #{tpu_custom_call.1} parent=1 // pred_region
      %s11 = ssub.s32 256, 256
      %12 = vsyncadd [#allocation3], %s11
      %s13 = sshll.u32 [#allocation2], 4
      %s14 = int_to_ptr.vmem [resolvable:$true] %s13
      %19 = dma.hbm_to_vmem [thread:$0]  %s0, 256, %s14, [#allocation3], 128, 128, 8
    $region5: #{tpu_custom_call.1} parent=1 // pred_fallthru
      _
    // Predicated region
    $region6: #{tpu_custom_call.1} parent=1 // pred_check
      _
    $region7: #{tpu_custom_call.1} parent=1 // pred_check_branch
      %21 = sbr.rel (0) target = $region9
    $region8: #{tpu_custom_call.1} parent=1 // pred_region
      %22 = dma.done [#allocation3], 256
    $region9: #{tpu_custom_call.1} parent=1 // pred_fallthru
      _
    %v23 = vld [vmem:[#allocation2] sm:$0xff]
    %v24 = vld [vmem:[#allocation2 + $0x8] sm:$0xff]
    %v27 = vcombine.high %v23, %v23
    %v28 = vcombine.high %v24, %v24
    %vm31 = vcmask 1043456
    %v32 = vsel %vm31, %v23, 0.0
    %v33 = vrot.slane %v32, 4
    %v34 = vadd.f32 %v32, %v33
    %v35 = vrot.slane %v34, 2
    %v36 = vadd.f32 %v34, %v35
    %v37 = vrot.slane %v36, 1
    %v38 = vadd.f32 %v36, %v37
    %v39 = vsel %vm31, %v27, 0.0
    %v40 = vrot.slane %v39, 4
    %v41 = vadd.f32 %v39, %v40
    %v42 = vrot.slane %v41, 2
    %v43 = vadd.f32 %v41, %v42
    %v44 = vrot.slane %v43, 1
    %v45 = vadd.f32 %v43, %v44
    %v46 = vsel %vm31, %v24, 0.0
    %v47 = vrot.slane %v46, 4
    %v48 = vadd.f32 %v46, %v47
    %v49 = vrot.slane %v48, 2
    %v50 = vadd.f32 %v48, %v49
    %v51 = vrot.slane %v50, 1
    %v52 = vadd.f32 %v50, %v51
    %v53 = vsel %vm31, %v28, 0.0
    %v54 = vrot.slane %v53, 4
    %v55 = vadd.f32 %v53, %v54
    %v56 = vrot.slane %v55, 2
    %v57 = vadd.f32 %v55, %v56
    %v58 = vrot.slane %v57, 1
    %v59 = vadd.f32 %v57, %v58
    %v64 = vcombine.low %v38, %v45
    %v66 = vunpack.c.l.s4 1983009808
    %v67 = vunpack.c.0.s8 %v66
    %v68 = vlaneseq
    %v69 = vshrl.u32 %v68, 7
    %v70 = vsub.s32 %v67, %v69
    %v71 = vrot.slane %v64, %v70
    %v72 = vcombine.low %v52, %v59
    %v74 = vunpack.c.l.s4 1983009808
    %v75 = vunpack.c.0.s8 %v74
    %v76 = vlaneseq
    %v77 = vshrl.u32 %v76, 7
    %v78 = vsub.s32 %v75, %v77
    %v79 = vrot.slane %v72, %v78
    %vm80 = vcmask 1044484
    %v81 = vsel %vm80, %v71, %v71
    %vm82 = vcmask 1046534
    %v83 = vsel %vm82, %v71, %v81
    %v84 = vrot.slane %v79, 7
    %vm85 = vcmask 1041409
    %v86 = vsel %vm85, %v84, %v83
    %vm87 = vcmask 1043459
    %v88 = vsel %vm87, %v84, %v86
    %vm89 = vcmask 1045509
    %v90 = vsel %vm89, %v84, %v88
    %vm91 = vcmask 1047559
    %v92 = vsel %vm91, %v84, %v90
    %94 = vst [vmem:[#allocation5] sm:$0xf] %v92
    // Predicated region
    $region10: #{tpu_custom_call.1} parent=1 // pred_check
      _
    $region11: #{tpu_custom_call.1} parent=1 // pred_check_branch
      %96 = sbr.rel (0) target = $region13
    $region12: #{tpu_custom_call.1} parent=1 // pred_region
      %s98 = ssub.s32 64, 64
      %99 = vsyncadd [#allocation4], %s98
      %s101 = sshll.u32 [#allocation5], 4
      %s102 = int_to_ptr.vmem [resolvable:$true] %s101
      %104 = dma.vmem_to_hbm [thread:$0]  %s102, 64, %s1, [#allocation4]
    $region13: #{tpu_custom_call.1} parent=1 // pred_fallthru
      _
    // Predicated region
    $region14: #{tpu_custom_call.1} parent=1 // pred_check
      _
    $region15: #{tpu_custom_call.1} parent=1 // pred_check_branch
      %106 = sbr.rel (0) target = $region17
    $region16: #{tpu_custom_call.1} parent=1 // pred_region
      %107 = dma.done [#allocation4], 64
    $region17: #{tpu_custom_call.1} parent=1 // pred_fallthru
      _
    %108 = vsyncpa [#allocation3], 1
    %109 = vsyncpa [#allocation4], 1

</llo_original>
